<compile_context>
chip_gen: v6e
topology: v6e:2x2x1
jax: 0.10.0
libtpu: 0.0.40
codegen_flags: <defaults>
</compile_context>

<pallas_src>
import math

import numpy as np
import jax
import jax.numpy as jnp
from jax import lax
from jax.experimental import pallas as pl
from jax.experimental.pallas import tpu as pltpu


# ---------------------------------------------------------------------------
# Wrapper-side weight preparation (tiny, weight-sized)
# ---------------------------------------------------------------------------
def _build_banded_weight(conv_w, in_w):
    """Fold 3x3 conv taps + x2 nearest upsample (H & W) + zero padding + even/odd row split
    into one matrix B of shape [3*W*Cin, 2*Wo*Cout] such that

        out[2r + p, w, co] = concat(x[r-1], x[r], x[r+1]) @ B[:, p*Wo*Cout + w*Cout + co]

    Input rows are flattened with lane = wi*Cin + ci; x[-1] / x[H] are zero rows (H zero-pad);
    out-of-range columns are the W zero-pad (left as zero coefficients)."""
    cout, cin, kh, kw = conv_w.shape
    assert (kh, kw) == (3, 3)
    wo = 2 * in_w
    # m[t, wi, p, w, dh, dw] = 1 iff conv tap (dh, dw) of output (row parity p, column w)
    # reads input-row slot t (0 = x[r-1], 1 = x[r], 2 = x[r+1]) at input column wi.
    m = np.zeros((3, in_w, 2, wo, kh, kw), np.float32)
    for p in range(2):
        for dh in range(kh):
            t = 1 + (p + dh - 1) // 2           # which of the three input rows
            for dw in range(kw):
                for w in range(wo):
                    v = w + dw - 1              # upsampled column (pre-pad)
                    if 0 <= v < wo:             # else: W zero-padding column
                        m[t, v // 2, p, w, dh, dw] = 1.0
    b = jnp.einsum("tipwhd,ochd->ticpwo", jnp.asarray(m), conv_w.astype(jnp.float32))
    return b.reshape(3 * in_w * cin, 2 * wo * cout)


def _pick_tile_rows(total_rows, cap=256):
    if total_rows % 8 != 0:
        return total_rows              # single tile (block == full array dim is legal)
    best = 8
    d = 8
    while d <= min(cap, total_rows):
        if total_rows % d == 0:
            best = d
        d += 8
    return best


# ---------------------------------------------------------------------------
# Kernels (one MXU matmul per grid step, no scratch, no in-kernel copies)
# ---------------------------------------------------------------------------
def _stats_kernel(x_ref, b_ref, stats_ref):
    """Pass 1: per-tile partial sum / sum-of-squares of the (bias-less) conv output."""
    conv = jnp.dot(x_ref[...], b_ref[...], preferred_element_type=jnp.float32)
    s = jnp.sum(conv, axis=0, keepdims=True)
    sq = jnp.sum(conv * conv, axis=0, keepdims=True)
    stats_ref[0] = jnp.concatenate([s, sq], axis=0)


def _apply_kernel(x_ref, b_ref, affine_ref, out_ref):
    """Pass 2: recompute conv tile, apply folded BN affine + ReLU, one lane-dense store."""
    conv = jnp.dot(x_ref[...], b_ref[...], preferred_element_type=jnp.float32)
    y = conv * affine_ref[0:1, :] + affine_ref[1:2, :]
    out_ref[...] = jnp.maximum(y, 0.0).astype(out_ref.dtype)


# ---------------------------------------------------------------------------
# Public wrapper
# ---------------------------------------------------------------------------
def deconv_block(x, conv_w, conv_b, bn_gamma, bn_beta, *,
                 stride=2, kernel_size=3, eps=1e-5,
                 compute_dtype=jnp.bfloat16, out_dtype=jnp.float32, tile_rows=None):
    """x: [N, Cin, H, W] (NCHW, like PyTorch).  Returns [N, Cout, 2H, 2W] in out_dtype (NCHW).
    Set out_dtype=bfloat16 (and keep NHWC before the final transpose) if the consumer allows it
    to halve output HBM traffic."""
    if stride != 2 or kernel_size != 3:
        # TODO(synk): generalise the banded-weight construction beyond kernel_size=3, stride=2.
        raise NotImplementedError("deconv_block kernel assumes kernel_size=3, stride=2")

    n, cin, h, w = x.shape
    cout = conv_w.shape[0]
    ho, wo = 2 * h, 2 * w
    wc = w * cin                       # input lanes per row (wi*Cin + ci)
    l = wo * cout                      # output lanes per parity (w*Cout + co)
    rows = n * h                       # all images' input rows packed on one axis
    kdim = 3 * wc
    kpad = ((kdim + 127) // 128) * 128

    if tile_rows is None:
        tile_rows = _pick_tile_rows(rows)
    assert rows % tile_rows == 0 and (tile_rows % 8 == 0 or tile_rows == rows), (rows, tile_rows)
    n_tiles = rows // tile_rows
    grid = (n_tiles,)

    # ---- layout prep (input/weight-sized only; the 4x upsampled tensor is never built) ----
    x_rows = jnp.transpose(x, (0, 2, 3, 1)).reshape(n, h, wc).astype(jnp.float32)  # NCHW->rows
    zero_row = jnp.zeros((n, 1, wc), jnp.float32)
    x3 = jnp.concatenate(
        [jnp.concatenate([zero_row, x_rows[:, :-1]], axis=1),   # x[r-1]  (zero for r == 0)
         x_rows,                                                # x[r]
         jnp.concatenate([x_rows[:, 1:], zero_row], axis=1)],   # x[r+1]  (zero for r == H-1)
        axis=-1).reshape(rows, kdim)
    banded = _build_banded_weight(conv_w, w)                    # (kdim, 2*l) f32
    if kpad != kdim:                                            # zero-pad K to a 128 multiple
        x3 = jnp.pad(x3, ((0, 0), (0, kpad - kdim)))
        banded = jnp.pad(banded, ((0, kpad - kdim), (0, 0)))
    x3 = x3.astype(compute_dtype)
    banded = banded.astype(compute_dtype)

    x_spec = pl.BlockSpec((tile_rows, kpad), lambda j: (j, 0))
    b_spec = pl.BlockSpec((kpad, 2 * l), lambda j: (0, 0))      # constant index -> no re-DMA
    affine_spec = pl.BlockSpec((2, 2 * l), lambda j: (0, 0))
    vmem_limit = 32 * 1024 * 1024

    # ---------- pass 1: per-tile partial conv statistics (fully parallel grid) ----------
    stats = pl.pallas_call(
        _stats_kernel,
        out_shape=jax.ShapeDtypeStruct((n_tiles, 2, 2 * l), jnp.float32),
        grid_spec=pltpu.PrefetchScalarGridSpec(
            num_scalar_prefetch=0, grid=grid,
            in_specs=[x_spec, b_spec],
            out_specs=pl.BlockSpec((1, 2, 2 * l), lambda j: (j, 0, 0))),
        compiler_params=pltpu.CompilerParams(
            dimension_semantics=("parallel",),
            vmem_limit_bytes=vmem_limit),
    )(x3, banded)

    # ---------- fold BN (biased batch stats) + gamma/beta into per-lane scale/shift ----------
    # Note: the conv bias cancels exactly under batch-stat BN (the batch mean contains it),
    # so the bias-less conv statistics are the right ones.  E[x^2]-E[x]^2 is accumulated in
    # f32 and clamped at 0; fine for roughly zero-mean activations.
    m_total = n * ho * wo
    sums = jnp.sum(stats, axis=0)                               # (2, 2*l)
    sum_c = sums[0].reshape(2 * wo, cout).sum(axis=0)
    sumsq_c = sums[1].reshape(2 * wo, cout).sum(axis=0)
    mean_c = sum_c / m_total
    var_c = jnp.maximum(sumsq_c / m_total - mean_c * mean_c, 0.0)
    inv_std = lax.rsqrt(var_c + eps)
    scale_c = bn_gamma.astype(jnp.float32) * inv_std
    shift_c = bn_beta.astype(jnp.float32) - mean_c * scale_c
    affine = jnp.stack([jnp.tile(scale_c, 2 * wo),
                        jnp.tile(shift_c, 2 * wo)], axis=0)     # (2, 2*l) f32

    # ---------- pass 2: conv (recompute) + affine + ReLU, single lane-dense store ----------
    itemsize = jnp.dtype(compute_dtype).itemsize
    matmul_flops = 2 * rows * kpad * (2 * l)
    bytes_accessed = (x3.size * itemsize + banded.size * itemsize
                      + affine.size * 4 + rows * 2 * l * jnp.dtype(out_dtype).itemsize)
    out_flat = pl.pallas_call(
        _apply_kernel,
        out_shape=jax.ShapeDtypeStruct((rows, 2 * l), out_dtype),
        grid_spec=pltpu.PrefetchScalarGridSpec(
            num_scalar_prefetch=0, grid=grid,
            in_specs=[x_spec, b_spec, affine_spec],
            out_specs=pl.BlockSpec((tile_rows, 2 * l), lambda j: (j, 0))),
        compiler_params=pltpu.CompilerParams(
            dimension_semantics=("parallel",),
            vmem_limit_bytes=vmem_limit),
        cost_estimate=pl.CostEstimate(flops=matmul_flops, transcendentals=0,
                                      bytes_accessed=bytes_accessed),
    )(x3, banded, affine)

    # ---------- interleave even/odd rows (copy-free reshape) + NHWC -> NCHW ----------
    out_nhwc = out_flat.reshape(n, h, 2, wo, cout).reshape(n, ho, wo, cout)
    return jnp.transpose(out_nhwc, (0, 3, 1, 2))


# ---------------------------------------------------------------------------
# Pure-JAX reference of the same forward pass (NCHW)
# ---------------------------------------------------------------------------
def _reference(x, conv_w, conv_b, bn_gamma, bn_beta, *, stride=2, pad=1):
    x_up = jnp.repeat(jnp.repeat(x, stride, axis=2), stride, axis=3)
    conv = lax.conv_general_dilated(
        x_up, conv_w, window_strides=(1, 1), padding=((pad, pad), (pad, pad)),
        dimension_numbers=("NCHW", "OIHW", "NCHW"),
        precision=lax.Precision.HIGHEST,
    ) + conv_b[None, :, None, None]
    mean = jnp.mean(conv, axis=(0, 2, 3), keepdims=True)
    var = jnp.mean((conv - mean) ** 2, axis=(0, 2, 3), keepdims=True)
    y = (conv - mean) * lax.rsqrt(var + 1e-5)
    y = y * bn_gamma[None, :, None, None] + bn_beta[None, :, None, None]
    return jnp.maximum(y, 0.0)


if __name__ == "__main__":
    N, Cin, H, W = 2, 4, 16, 16
    Cout, K, STRIDE = 8, 3, 2

    key = jax.random.PRNGKey(0)
    kx, kw_key, kb_key = jax.random.split(key, 3)
    x = jax.random.normal(kx, (N, Cin, H, W), jnp.float32)

    # Deterministic parameter init (mimics PyTorch defaults: kaiming-uniform conv,
    # BatchNorm weight=1, bias=0).
    fan_in = Cin * K * K
    bound = 1.0 / math.sqrt(fan_in)
    conv_w = jax.random.uniform(kw_key, (Cout, Cin, K, K), jnp.float32, -bound, bound)
    conv_b = jax.random.uniform(kb_key, (Cout,), jnp.float32, -bound, bound)
    bn_gamma = jnp.ones((Cout,), jnp.float32)
    bn_beta = jnp.zeros((Cout,), jnp.float32)

    y_ref = _reference(x, conv_w, conv_b, bn_gamma, bn_beta, stride=STRIDE, pad=1)

    # f32 MXU operands: strict correctness check.
    y = deconv_block(x, conv_w, conv_b, bn_gamma, bn_beta,
                     stride=STRIDE, kernel_size=K, compute_dtype=jnp.float32)
    y = jax.block_until_ready(y)
    assert y.shape == (N, Cout, STRIDE * H, STRIDE * W), y.shape
    err = float(jnp.max(jnp.abs(y - y_ref)))
    assert err < 1e-2, f"f32 path mismatch vs JAX reference: {err}"

    # bf16 MXU operands (default perf path on all TPU generations); BN/ReLU stay f32.
    y_bf16 = deconv_block(x, conv_w, conv_b, bn_gamma, bn_beta,
                          stride=STRIDE, kernel_size=K, compute_dtype=jnp.bfloat16)
    y_bf16 = jax.block_until_ready(y_bf16)
    err_bf16 = float(jnp.max(jnp.abs(y_bf16 - y_ref)))
    assert err_bf16 < 5e-2, f"bf16 path mismatch vs JAX reference: {err_bf16}"

    print("KERNEL_OK")
</pallas_src>

<mosaic_0001>
module attributes {stable_mosaic.version = 11 : i64} {
  func.func @_stats_kernel(%arg0: i32, %arg1: memref<32x256xf32, #tpu.memory_space<vmem>>, %arg2: memref<256x512xf32, #tpu.memory_space<vmem>>, %arg3: memref<1x2x512xf32, #tpu.memory_space<vmem>>) attributes {dimension_semantics = [#tpu.dimension_semantics<parallel>], iteration_bounds = array<i64: 1>, scalar_prefetch = 0 : i64, scratch_operands = 0 : i64, tpu.core_type = #tpu.core_type<tc>, window_params = [{transform_indices = @transform_0, window_bounds = array<i64: 32, 256>}, {pipeline_mode = #tpu.pipeline_mode<synchronous>, transform_indices = @transform_1, window_bounds = array<i64: 256, 512>}, {transform_indices = @transform_2, window_bounds = array<i64: 1, 2, 512>}]} {
    %c0 = arith.constant 0 : index
    %c0_0 = arith.constant 0 : index
    %0 = vector.load %arg1[%c0, %c0_0] : memref<32x256xf32, #tpu.memory_space<vmem>>, vector<32x256xf32>
    %c0_1 = arith.constant 0 : index
    %c0_2 = arith.constant 0 : index
    %1 = vector.load %arg2[%c0_1, %c0_2] : memref<256x512xf32, #tpu.memory_space<vmem>>, vector<256x512xf32>
    %cst = arith.constant dense<0.000000e+00> : vector<32x512xf32>
    %2 = tpu.matmul %0, %1, %cst {dimension_numbers = #tpu.dot_dimension_numbers<[1], [0], [0], [1], [0, 0, 1, 1], [], []>} : vector<32x256xf32>, vector<256x512xf32>, vector<32x512xf32> -> vector<32x512xf32>
    %cst_3 = arith.constant dense<0.000000e+00> : vector<512xf32>
    %3 = vector.multi_reduction <add>, %2, %cst_3 [0] : vector<32x512xf32> to vector<512xf32>
    %4 = vector.shape_cast %3 : vector<512xf32> to vector<1x512xf32>
    %5 = arith.mulf %2, %2 : vector<32x512xf32>
    %cst_4 = arith.constant dense<0.000000e+00> : vector<512xf32>
    %6 = vector.multi_reduction <add>, %5, %cst_4 [0] : vector<32x512xf32> to vector<512xf32>
    %7 = vector.shape_cast %6 : vector<512xf32> to vector<1x512xf32>
    %8 = tpu.concatenate %4, %7 in 0 : vector<1x512xf32>, vector<1x512xf32> -> vector<2x512xf32>
    %c0_5 = arith.constant 0 : index
    %c0_6 = arith.constant 0 : index
    %c0_7 = arith.constant 0 : index
    %9 = vector.load %arg3[%c0_5, %c0_6, %c0_7] : memref<1x2x512xf32, #tpu.memory_space<vmem>>, vector<1x2x512xf32>
    %10 = vector.shape_cast %9 : vector<1x2x512xf32> to vector<2x512xf32>
    %11 = vector.shape_cast %8 : vector<2x512xf32> to vector<1x2x512xf32>
    tpu.vector_store %arg3[%c0_5, %c0_6, %c0_7], %11 {strides = array<i32>} : memref<1x2x512xf32, #tpu.memory_space<vmem>>, vector<1x2x512xf32>,
    return
  }
  func.func @transform_0(%arg0: i32) -> (i32, i32) {
    %c0_i32 = arith.constant 0 : i32
    %c0_i32_0 = arith.constant 0 : i32
    return %arg0, %c0_i32 : i32, i32
  }
  func.func @transform_1(%arg0: i32) -> (i32, i32) {
    %c0_i32 = arith.constant 0 : i32
    %c0_i32_0 = arith.constant 0 : i32
    %c0_i32_1 = arith.constant 0 : i32
    return %c0_i32, %c0_i32_0 : i32, i32
  }
  func.func @transform_2(%arg0: i32) -> (i32, i32, i32) {
    %c0_i32 = arith.constant 0 : i32
    %c0_i32_0 = arith.constant 0 : i32
    %c0_i32_1 = arith.constant 0 : i32
    return %arg0, %c0_i32, %c0_i32_0 : i32, i32, i32
  }
}

</mosaic_0001>

<llo_original>
// kernel: tpu_custom_call.1
$region0: #{tpu_custom_call.1}
  #allocation0 [shape = 'u32[]', space=smem, size = 0x4, offset = 0x4, fixed_abs, tag = 'smem constant byte address 0x4 - core index']
  #allocation1 [shape = 'u32[144,128]{1,0:T(1,128)}', space=vmem, size = 0x12000, scoped, tag = 'internal scratch']
  %s0 = inlined_call_operand.hbm [shape: f32[32,256], index: 0, kind: input, shape index: {}]
  %s1 = inlined_call_operand.hbm [shape: f32[256,512], index: 1, kind: input, shape index: {}]
  %s2 = inlined_call_operand.hbm [shape: f32[1,2,512], index: 2, kind: output, shape index: {}]
  %s3 = sld [smem:[#allocation0]]
  $region26: #{tpu_custom_call.1} parent=0
    _
  %s5 = ssub.s32 1, %s3
  %s6 = scalar_select 0, %s5, %s3
  $region1: #{tpu_custom_call.1} parent=0
    #allocation2 [shape = 'u8[32768]{0}', space=vmem, size = 0x8000, scoped, tag = 'input window, operand 0, single buffered']
    #allocation3 [shape = 's32[1]{0}', space=sflag, size = 0x4, scoped, tag = 'scoped memory for tpu_custom_call.1']
    #allocation4 [shape = 's32[1]{0}', space=sflag, size = 0x4, scoped, tag = 'scoped memory for tpu_custom_call.1']
    #allocation5 [shape = 'u8[524288]{0}', space=vmem, size = 0x80000, scoped, tag = 'input window, operand 1, single buffered']
    #allocation6 [shape = 's32[1]{0}', space=sflag, size = 0x4, scoped, tag = 'scoped memory for tpu_custom_call.1']
    #allocation7 [shape = 'u8[4096]{0}', space=vmem, size = 0x1000, scoped, tag = 'output window, operand 0, single buffered']
    %7 = vsyncpa [#allocation3], 0
    %8 = vsyncpa [#allocation6], 0
    %9 = vsyncpa [#allocation4], 0
    // Predicated region
    $region2: #{tpu_custom_call.1} parent=1 // pred_check
      _
    $region3: #{tpu_custom_call.1} parent=1 // pred_check_branch
      %11 = sbr.rel (0) target = $region5
    $region4: #{tpu_custom_call.1} parent=1 // pred_region
      %s13 = ssub.s32 1024, 1024
      %14 = vsyncadd [#allocation3], %s13
      %s15 = sshll.u32 [#allocation2], 4
      %s16 = int_to_ptr.vmem [resolvable:$true] %s15
      %21 = dma.hbm_to_vmem [thread:$0]  %s0, 1024, %s16, [#allocation3], 256, 256, 16
    $region5: #{tpu_custom_call.1} parent=1 // pred_fallthru
      _
    // Predicated region
    $region6: #{tpu_custom_call.1} parent=1 // pred_check
      _
    $region7: #{tpu_custom_call.1} parent=1 // pred_check_branch
      %23 = sbr.rel (0) target = $region9
    $region8: #{tpu_custom_call.1} parent=1 // pred_region
      %s25 = ssub.s32 16384, 16384
      %26 = vsyncadd [#allocation6], %s25
      %s27 = sshll.u32 [#allocation5], 4
      %s28 = int_to_ptr.vmem [resolvable:$true] %s27
      %33 = dma.hbm_to_vmem [thread:$0]  %s1, 16384, %s28, [#allocation6], 512, 512, 32
    $region9: #{tpu_custom_call.1} parent=1 // pred_fallthru
      _
    // Predicated region
    $region10: #{tpu_custom_call.1} parent=1 // pred_check
      _
    $region11: #{tpu_custom_call.1} parent=1 // pred_check_branch
      %35 = sbr.rel (0) target = $region13
    $region12: #{tpu_custom_call.1} parent=1 // pred_region
      %36 = dma.done [#allocation3], 1024
    $region13: #{tpu_custom_call.1} parent=1 // pred_fallthru
      _
    // Predicated region
    $region14: #{tpu_custom_call.1} parent=1 // pred_check
      _
    $region15: #{tpu_custom_call.1} parent=1 // pred_check_branch
      %38 = sbr.rel (0) target = $region17
    $region16: #{tpu_custom_call.1} parent=1 // pred_region
      %39 = dma.done [#allocation6], 16384
    $region17: #{tpu_custom_call.1} parent=1 // pred_fallthru
      _
    %v40 = vld [vmem:[#allocation2] sm:$0xff]
    %v41 = vld [vmem:[#allocation2 + $0x8] sm:$0xff]
    %v42 = vld [vmem:[#allocation2 + $0x10] sm:$0xff]
    %v43 = vld [vmem:[#allocation2 + $0x18] sm:$0xff]
    %v44 = vld [vmem:[#allocation2 + $0x20] sm:$0xff]
    %v45 = vld [vmem:[#allocation2 + $0x28] sm:$0xff]
    %v46 = vld [vmem:[#allocation2 + $0x30] sm:$0xff]
    %v47 = vld [vmem:[#allocation2 + $0x38] sm:$0xff]
    %v48 = vld [vmem:[#allocation5] sm:$0xff]
    %v49 = vld [vmem:[#allocation5 + $0x8] sm:$0xff]
    %v50 = vld [vmem:[#allocation5 + $0x10] sm:$0xff]
    %v51 = vld [vmem:[#allocation5 + $0x18] sm:$0xff]
    %v52 = vld [vmem:[#allocation5 + $0x20] sm:$0xff]
    %v53 = vld [vmem:[#allocation5 + $0x28] sm:$0xff]
    %v54 = vld [vmem:[#allocation5 + $0x30] sm:$0xff]
    %v55 = vld [vmem:[#allocation5 + $0x38] sm:$0xff]
    %v56 = vld [vmem:[#allocation5 + $0x40] sm:$0xff]
    %v57 = vld [vmem:[#allocation5 + $0x48] sm:$0xff]
    %v58 = vld [vmem:[#allocation5 + $0x50] sm:$0xff]
    %v59 = vld [vmem:[#allocation5 + $0x58] sm:$0xff]
    %v60 = vld [vmem:[#allocation5 + $0x60] sm:$0xff]
    %v61 = vld [vmem:[#allocation5 + $0x68] sm:$0xff]
    %v62 = vld [vmem:[#allocation5 + $0x70] sm:$0xff]
    %v63 = vld [vmem:[#allocation5 + $0x78] sm:$0xff]
    %v64 = vld [vmem:[#allocation5 + $0x80] sm:$0xff]
    %v65 = vld [vmem:[#allocation5 + $0x88] sm:$0xff]
    %v66 = vld [vmem:[#allocation5 + $0x90] sm:$0xff]
    %v67 = vld [vmem:[#allocation5 + $0x98] sm:$0xff]
    %v68 = vld [vmem:[#allocation5 + $0xa0] sm:$0xff]
    %v69 = vld [vmem:[#allocation5 + $0xa8] sm:$0xff]
    %v70 = vld [vmem:[#allocation5 + $0xb0] sm:$0xff]
    %v71 = vld [vmem:[#allocation5 + $0xb8] sm:$0xff]
    %v72 = vld [vmem:[#allocation5 + $0xc0] sm:$0xff]
    %v73 = vld [vmem:[#allocation5 + $0xc8] sm:$0xff]
    %v74 = vld [vmem:[#allocation5 + $0xd0] sm:$0xff]
    %v75 = vld [vmem:[#allocation5 + $0xd8] sm:$0xff]
    %v76 = vld [vmem:[#allocation5 + $0xe0] sm:$0xff]
    %v77 = vld [vmem:[#allocation5 + $0xe8] sm:$0xff]
    %v78 = vld [vmem:[#allocation5 + $0xf0] sm:$0xff]
    %v79 = vld [vmem:[#allocation5 + $0xf8] sm:$0xff]
    %v80 = vld [vmem:[#allocation5 + $0x100] sm:$0xff]
    %v81 = vld [vmem:[#allocation5 + $0x108] sm:$0xff]
    %v82 = vld [vmem:[#allocation5 + $0x110] sm:$0xff]
    %v83 = vld [vmem:[#allocation5 + $0x118] sm:$0xff]
    %v84 = vld [vmem:[#allocation5 + $0x120] sm:$0xff]
    %v85 = vld [vmem:[#allocation5 + $0x128] sm:$0xff]
    %v86 = vld [vmem:[#allocation5 + $0x130] sm:$0xff]
    %v87 = vld [vmem:[#allocation5 + $0x138] sm:$0xff]
    %v88 = vld [vmem:[#allocation5 + $0x140] sm:$0xff]
    %v89 = vld [vmem:[#allocation5 + $0x148] sm:$0xff]
    %v90 = vld [vmem:[#allocation5 + $0x150] sm:$0xff]
    %v91 = vld [vmem:[#allocation5 + $0x158] sm:$0xff]
    %v92 = vld [vmem:[#allocation5 + $0x160] sm:$0xff]
    %v93 = vld [vmem:[#allocation5 + $0x168] sm:$0xff]
    %v94 = vld [vmem:[#allocation5 + $0x170] sm:$0xff]
    %v95 = vld [vmem:[#allocation5 + $0x178] sm:$0xff]
    %v96 = vld [vmem:[#allocation5 + $0x180] sm:$0xff]
    %v97 = vld [vmem:[#allocation5 + $0x188] sm:$0xff]
    %v98 = vld [vmem:[#allocation5 + $0x190] sm:$0xff]
    %v99 = vld [vmem:[#allocation5 + $0x198] sm:$0xff]
    %v100 = vld [vmem:[#allocation5 + $0x1a0] sm:$0xff]
    %v101 = vld [vmem:[#allocation5 + $0x1a8] sm:$0xff]
    %v102 = vld [vmem:[#allocation5 + $0x1b0] sm:$0xff]
    %v103 = vld [vmem:[#allocation5 + $0x1b8] sm:$0xff]
    %v104 = vld [vmem:[#allocation5 + $0x1c0] sm:$0xff]
    %v105 = vld [vmem:[#allocation5 + $0x1c8] sm:$0xff]
    %v106 = vld [vmem:[#allocation5 + $0x1d0] sm:$0xff]
    %v107 = vld [vmem:[#allocation5 + $0x1d8] sm:$0xff]
    %v108 = vld [vmem:[#allocation5 + $0x1e0] sm:$0xff]
    %v109 = vld [vmem:[#allocation5 + $0x1e8] sm:$0xff]
    %v110 = vld [vmem:[#allocation5 + $0x1f0] sm:$0xff]
    %v111 = vld [vmem:[#allocation5 + $0x1f8] sm:$0xff]
    %v112 = vld [vmem:[#allocation5 + $0x200] sm:$0xff]
    %v113 = vld [vmem:[#allocation5 + $0x208] sm:$0xff]
    %v114 = vld [vmem:[#allocation5 + $0x210] sm:$0xff]
    %v115 = vld [vmem:[#allocation5 + $0x218] sm:$0xff]
    %v116 = vld [vmem:[#allocation5 + $0x220] sm:$0xff]
    %v117 = vld [vmem:[#allocation5 + $0x228] sm:$0xff]
    %v118 = vld [vmem:[#allocation5 + $0x230] sm:$0xff]
    %v119 = vld [vmem:[#allocation5 + $0x238] sm:$0xff]
    %v120 = vld [vmem:[#allocation5 + $0x240] sm:$0xff]
    %v121 = vld [vmem:[#allocation5 + $0x248] sm:$0xff]
    %v122 = vld [vmem:[#allocation5 + $0x250] sm:$0xff]
    %v123 = vld [vmem:[#allocation5 + $0x258] sm:$0xff]
    %v124 = vld [vmem:[#allocation5 + $0x260] sm:$0xff]
    %v125 = vld [vmem:[#allocation5 + $0x268] sm:$0xff]
    %v126 = vld [vmem:[#allocation5 + $0x270] sm:$0xff]
    %v127 = vld [vmem:[#allocation5 + $0x278] sm:$0xff]
    %v128 = vld [vmem:[#allocation5 + $0x280] sm:$0xff]
    %v129 = vld [vmem:[#allocation5 + $0x288] sm:$0xff]
    %v130 = vld [vmem:[#allocation5 + $0x290] sm:$0xff]
    %v131 = vld [vmem:[#allocation5 + $0x298] sm:$0xff]
    %v132 = vld [vmem:[#allocation5 + $0x2a0] sm:$0xff]
    %v133 = vld [vmem:[#allocation5 + $0x2a8] sm:$0xff]
    %v134 = vld [vmem:[#allocation5 + $0x2b0] sm:$0xff]
    %v135 = vld [vmem:[#allocation5 + $0x2b8] sm:$0xff]
    %v136 = vld [vmem:[#allocation5 + $0x2c0] sm:$0xff]
    %v137 = vld [vmem:[#allocation5 + $0x2c8] sm:$0xff]
    %v138 = vld [vmem:[#allocation5 + $0x2d0] sm:$0xff]
    %v139 = vld [vmem:[#allocation5 + $0x2d8] sm:$0xff]
    %v140 = vld [vmem:[#allocation5 + $0x2e0] sm:$0xff]
    %v141 = vld [vmem:[#allocation5 + $0x2e8] sm:$0xff]
    %v142 = vld [vmem:[#allocation5 + $0x2f0] sm:$0xff]
    %v143 = vld [vmem:[#allocation5 + $0x2f8] sm:$0xff]
    %v144 = vld [vmem:[#allocation5 + $0x300] sm:$0xff]
    %v145 = vld [vmem:[#allocation5 + $0x308] sm:$0xff]
    %v146 = vld [vmem:[#allocation5 + $0x310] sm:$0xff]
    %v147 = vld [vmem:[#allocation5 + $0x318] sm:$0xff]
    %v148 = vld [vmem:[#allocation5 + $0x320] sm:$0xff]
    %v149 = vld [vmem:[#allocation5 + $0x328] sm:$0xff]
    %v150 = vld [vmem:[#allocation5 + $0x330] sm:$0xff]
    %v151 = vld [vmem:[#allocation5 + $0x338] sm:$0xff]
    %v152 = vld [vmem:[#allocation5 + $0x340] sm:$0xff]
    %v153 = vld [vmem:[#allocation5 + $0x348] sm:$0xff]
    %v154 = vld [vmem:[#allocation5 + $0x350] sm:$0xff]
    %v155 = vld [vmem:[#allocation5 + $0x358] sm:$0xff]
    %v156 = vld [vmem:[#allocation5 + $0x360] sm:$0xff]
    %v157 = vld [vmem:[#allocation5 + $0x368] sm:$0xff]
    %v158 = vld [vmem:[#allocation5 + $0x370] sm:$0xff]
    %v159 = vld [vmem:[#allocation5 + $0x378] sm:$0xff]
    %v160 = vld [vmem:[#allocation5 + $0x380] sm:$0xff]
    %v161 = vld [vmem:[#allocation5 + $0x388] sm:$0xff]
    %v162 = vld [vmem:[#allocation5 + $0x390] sm:$0xff]
    %v163 = vld [vmem:[#allocation5 + $0x398] sm:$0xff]
    %v164 = vld [vmem:[#allocation5 + $0x3a0] sm:$0xff]
    %v165 = vld [vmem:[#allocation5 + $0x3a8] sm:$0xff]
    %v166 = vld [vmem:[#allocation5 + $0x3b0] sm:$0xff]
    %v167 = vld [vmem:[#allocation5 + $0x3b8] sm:$0xff]
    %v168 = vld [vmem:[#allocation5 + $0x3c0] sm:$0xff]
    %v169 = vld [vmem:[#allocation5 + $0x3c8] sm:$0xff]
    %v170 = vld [vmem:[#allocation5 + $0x3d0] sm:$0xff]
    %v171 = vld [vmem:[#allocation5 + $0x3d8] sm:$0xff]
    %v172 = vld [vmem:[#allocation5 + $0x3e0] sm:$0xff]
    %v173 = vld [vmem:[#allocation5 + $0x3e8] sm:$0xff]
    %v174 = vld [vmem:[#allocation5 + $0x3f0] sm:$0xff]
    %v175 = vld [vmem:[#allocation5 + $0x3f8] sm:$0xff]
    %176 = vmatprep.subr.mxu0 %v109
    %177 = vmatpush1.msra.mxu0 %v108
    %178 = vmatprep.subr.mxu0 %v105
    %179 = vmatpush1.msra.mxu0 %v104
    %180 = vmatprep.subr.mxu0 %v101
    %181 = vmatpush1.msra.mxu0 %v100
    %182 = vmatprep.subr.mxu0 %v97
    %183 = vmatpush1.msra.mxu0 %v96
    %184 = vmatprep.subr.mxu0 %v93
    %185 = vmatpush1.msra.mxu0 %v92
    %186 = vmatprep.subr.mxu0 %v89
    %187 = vmatpush1.msra.mxu0 %v88
    %188 = vmatprep.subr.mxu0 %v85
    %189 = vmatpush1.msra.mxu0 %v84
    %190 = vmatprep.subr.mxu0 %v81
    %191 = vmatpush1.msra.mxu0 %v80
    %192 = vmatprep.subr.mxu0 %v77
    %193 = vmatpush1.msra.mxu0 %v76
    %194 = vmatprep.subr.mxu0 %v73
    %195 = vmatpush1.msra.mxu0 %v72
    %196 = vmatprep.subr.mxu0 %v69
    %197 = vmatpush1.msra.mxu0 %v68
    %198 = vmatprep.subr.mxu0 %v65
    %199 = vmatpush1.msra.mxu0 %v64
    %200 = vmatprep.subr.mxu0 %v61
    %201 = vmatpush1.msra.mxu0 %v60
    %202 = vmatprep.subr.mxu0 %v57
    %203 = vmatpush1.msra.mxu0 %v56
    %204 = vmatprep.subr.mxu0 %v53
    %205 = vmatpush1.msra.mxu0 %v52
    %206 = vmatprep.subr.mxu0 %v49
    %207 = vmatpush1.msra.mxu0 %v48
    %208 = vmatprep.subr.mxu0 %v173
    %209 = vmatpush2.msra.mxu0 %v172
    %210 = vmatprep.subr.mxu0 %v169
    %211 = vmatpush2.msra.mxu0 %v168
    %212 = vmatprep.subr.mxu0 %v165
    %213 = vmatpush2.msra.mxu0 %v164
    %214 = vmatprep.subr.mxu0 %v161
    %215 = vmatpush2.msra.mxu0 %v160
    %216 = vmatprep.subr.mxu0 %v157
    %217 = vmatpush2.msra.mxu0 %v156
    %218 = vmatprep.subr.mxu0 %v153
    %219 = vmatpush2.msra.mxu0 %v152
    %220 = vmatprep.subr.mxu0 %v149
    %221 = vmatpush2.msra.mxu0 %v148
    %222 = vmatprep.subr.mxu0 %v145
    %223 = vmatpush2.msra.mxu0 %v144
    %224 = vmatprep.subr.mxu0 %v141
    %225 = vmatpush2.msra.mxu0 %v140
    %226 = vmatprep.subr.mxu0 %v137
    %227 = vmatpush2.msra.mxu0 %v136
    %228 = vmatprep.subr.mxu0 %v133
    %229 = vmatpush2.msra.mxu0 %v132
    %230 = vmatprep.subr.mxu0 %v129
    %231 = vmatpush2.msra.mxu0 %v128
    %232 = vmatprep.subr.mxu0 %v125
    %233 = vmatpush2.msra.mxu0 %v124
    %234 = vmatprep.subr.mxu0 %v121
    %235 = vmatpush2.msra.mxu0 %v120
    %236 = vmatprep.subr.mxu0 %v117
    %237 = vmatpush2.msra.mxu0 %v116
    %238 = vmatprep.subr.mxu0 %v113
    %239 = vmatpush2.msra.mxu0 %v112
    %240 = vmatprep.mubr.f32.mxu0 %v41
    %241 = vmatmul.mubr.f32.gmra.mxu0 %v40
    %v242 = vpop.f32.mrf.mxu0
    %v243 = vadd.f32 0.0, %v242
    %v244 = vpop.f32.mrf.mxu0
    %v245 = vadd.f32 0.0, %v244
    %246 = vmatprep.mubr.f32.mxu0 %v43
    %247 = vmatmul.mubr.f32.gmra.mxu0 %v42
    %v248 = vpop.f32.mrf.mxu0
    %v249 = vadd.f32 0.0, %v248
    %v250 = vpop.f32.mrf.mxu0
    %v251 = vadd.f32 0.0, %v250
    %252 = vmatprep.mubr.f32.mxu0 %v45
    %253 = vmatmul.mubr.f32.gmra.mxu0 %v44
    %v254 = vpop.f32.mrf.mxu0
    %v255 = vadd.f32 0.0, %v254
    %v256 = vpop.f32.mrf.mxu0
    %v257 = vadd.f32 0.0, %v256
    %258 = vmatprep.mubr.f32.mxu0 %v47
    %259 = vmatmul.mubr.f32.gmra.mxu0 %v46
    %v260 = vpop.f32.mrf.mxu0
    %v261 = vadd.f32 0.0, %v260
    %v262 = vpop.f32.mrf.mxu0
    %v263 = vadd.f32 0.0, %v262
    %264 = vdwg.mxu0
    %265 = vmatprep.subr.mxu0 %v111
    %266 = vmatpush1.msra.mxu0 %v110
    %267 = vmatprep.subr.mxu0 %v107
    %268 = vmatpush1.msra.mxu0 %v106
    %269 = vmatprep.subr.mxu0 %v103
    %270 = vmatpush1.msra.mxu0 %v102
    %271 = vmatprep.subr.mxu0 %v99
    %272 = vmatpush1.msra.mxu0 %v98
    %273 = vmatprep.subr.mxu0 %v95
    %274 = vmatpush1.msra.mxu0 %v94
    %275 = vmatprep.subr.mxu0 %v91
    %276 = vmatpush1.msra.mxu0 %v90
    %277 = vmatprep.subr.mxu0 %v87
    %278 = vmatpush1.msra.mxu0 %v86
    %279 = vmatprep.subr.mxu0 %v83
    %280 = vmatpush1.msra.mxu0 %v82
    %281 = vmatprep.subr.mxu0 %v79
    %282 = vmatpush1.msra.mxu0 %v78
    %283 = vmatprep.subr.mxu0 %v75
    %284 = vmatpush1.msra.mxu0 %v74
    %285 = vmatprep.subr.mxu0 %v71
    %286 = vmatpush1.msra.mxu0 %v70
    %287 = vmatprep.subr.mxu0 %v67
    %288 = vmatpush1.msra.mxu0 %v66
    %289 = vmatprep.subr.mxu0 %v63
    %290 = vmatpush1.msra.mxu0 %v62
    %291 = vmatprep.subr.mxu0 %v59
    %292 = vmatpush1.msra.mxu0 %v58
    %293 = vmatprep.subr.mxu0 %v55
    %294 = vmatpush1.msra.mxu0 %v54
    %295 = vmatprep.subr.mxu0 %v51
    %296 = vmatpush1.msra.mxu0 %v50
    %297 = vmatprep.subr.mxu0 %v175
    %298 = vmatpush2.msra.mxu0 %v174
    %299 = vmatprep.subr.mxu0 %v171
    %300 = vmatpush2.msra.mxu0 %v170
    %301 = vmatprep.subr.mxu0 %v167
    %302 = vmatpush2.msra.mxu0 %v166
    %303 = vmatprep.subr.mxu0 %v163
    %304 = vmatpush2.msra.mxu0 %v162
    %305 = vmatprep.subr.mxu0 %v159
    %306 = vmatpush2.msra.mxu0 %v158
    %307 = vmatprep.subr.mxu0 %v155
    %308 = vmatpush2.msra.mxu0 %v154
    %309 = vmatprep.subr.mxu0 %v151
    %310 = vmatpush2.msra.mxu0 %v150
    %311 = vmatprep.subr.mxu0 %v147
    %312 = vmatpush2.msra.mxu0 %v146
    %313 = vmatprep.subr.mxu0 %v143
    %314 = vmatpush2.msra.mxu0 %v142
    %315 = vmatprep.subr.mxu0 %v139
    %316 = vmatpush2.msra.mxu0 %v138
    %317 = vmatprep.subr.mxu0 %v135
    %318 = vmatpush2.msra.mxu0 %v134
    %319 = vmatprep.subr.mxu0 %v131
    %320 = vmatpush2.msra.mxu0 %v130
    %321 = vmatprep.subr.mxu0 %v127
    %322 = vmatpush2.msra.mxu0 %v126
    %323 = vmatprep.subr.mxu0 %v123
    %324 = vmatpush2.msra.mxu0 %v122
    %325 = vmatprep.subr.mxu0 %v119
    %326 = vmatpush2.msra.mxu0 %v118
    %327 = vmatprep.subr.mxu0 %v115
    %328 = vmatpush2.msra.mxu0 %v114
    %329 = vmatprep.mubr.f32.mxu0 %v41
    %330 = vmatmul.mubr.f32.gmra.mxu0 %v40
    %v331 = vpop.f32.mrf.mxu0
    %v332 = vadd.f32 0.0, %v331
    %v333 = vpop.f32.mrf.mxu0
    %v334 = vadd.f32 0.0, %v333
    %335 = vmatprep.mubr.f32.mxu0 %v43
    %336 = vmatmul.mubr.f32.gmra.mxu0 %v42
    %v337 = vpop.f32.mrf.mxu0
    %v338 = vadd.f32 0.0, %v337
    %v339 = vpop.f32.mrf.mxu0
    %v340 = vadd.f32 0.0, %v339
    %341 = vmatprep.mubr.f32.mxu0 %v45
    %342 = vmatmul.mubr.f32.gmra.mxu0 %v44
    %v343 = vpop.f32.mrf.mxu0
    %v344 = vadd.f32 0.0, %v343
    %v345 = vpop.f32.mrf.mxu0
    %v346 = vadd.f32 0.0, %v345
    %347 = vmatprep.mubr.f32.mxu0 %v47
    %348 = vmatmul.mubr.f32.gmra.mxu0 %v46
    %v349 = vpop.f32.mrf.mxu0
    %v350 = vadd.f32 0.0, %v349
    %v351 = vpop.f32.mrf.mxu0
    %v352 = vadd.f32 0.0, %v351
    %353 = vdwg.mxu0
    %v354 = vadd.f32 %v243, %v249
    %v355 = vadd.f32 %v354, %v255
    %v356 = vadd.f32 %v355, %v261
    %v357 = vrot.slane %v356, 4
    %v358 = vadd.f32 %v356, %v357
    %v359 = vrot.slane %v358, 2
    %v360 = vadd.f32 %v358, %v359
    %v361 = vrot.slane %v360, 1
    %v362 = vadd.f32 %v360, %v361
    %v363 = vadd.f32 %v245, %v251
    %v364 = vadd.f32 %v363, %v257
    %v365 = vadd.f32 %v364, %v263
    %v366 = vrot.slane %v365, 4
    %v367 = vadd.f32 %v365, %v366
    %v368 = vrot.slane %v367, 2
    %v369 = vadd.f32 %v367, %v368
    %v370 = vrot.slane %v369, 1
    %v371 = vadd.f32 %v369, %v370
    %v372 = vadd.f32 %v332, %v338
    %v373 = vadd.f32 %v372, %v344
    %v374 = vadd.f32 %v373, %v350
    %v375 = vrot.slane %v374, 4
    %v376 = vadd.f32 %v374, %v375
    %v377 = vrot.slane %v376, 2
    %v378 = vadd.f32 %v376, %v377
    %v379 = vrot.slane %v378, 1
    %v380 = vadd.f32 %v378, %v379
    %v381 = vadd.f32 %v334, %v340
    %v382 = vadd.f32 %v381, %v346
    %v383 = vadd.f32 %v382, %v352
    %v384 = vrot.slane %v383, 4
    %v385 = vadd.f32 %v383, %v384
    %v386 = vrot.slane %v385, 2
    %v387 = vadd.f32 %v385, %v386
    %v388 = vrot.slane %v387, 1
    %v389 = vadd.f32 %v387, %v388
    %v390 = vmul.f32 %v243, %v243
    %v391 = vmul.f32 %v245, %v245
    %v392 = vmul.f32 %v332, %v332
    %v393 = vmul.f32 %v334, %v334
    %v394 = vmul.f32 %v249, %v249
    %v395 = vmul.f32 %v251, %v251
    %v396 = vmul.f32 %v338, %v338
    %v397 = vmul.f32 %v340, %v340
    %v398 = vmul.f32 %v255, %v255
    %v399 = vmul.f32 %v257, %v257
    %v400 = vmul.f32 %v344, %v344
    %v401 = vmul.f32 %v346, %v346
    %v402 = vmul.f32 %v261, %v261
    %v403 = vmul.f32 %v263, %v263
    %v404 = vmul.f32 %v350, %v350
    %v405 = vmul.f32 %v352, %v352
    %v406 = vadd.f32 %v390, %v394
    %v407 = vadd.f32 %v406, %v398
    %v408 = vadd.f32 %v407, %v402
    %v409 = vrot.slane %v408, 4
    %v410 = vadd.f32 %v408, %v409
    %v411 = vrot.slane %v410, 2
    %v412 = vadd.f32 %v410, %v411
    %v413 = vrot.slane %v412, 1
    %v414 = vadd.f32 %v412, %v413
    %v415 = vadd.f32 %v391, %v395
    %v416 = vadd.f32 %v415, %v399
    %v417 = vadd.f32 %v416, %v403
    %v418 = vrot.slane %v417, 4
    %v419 = vadd.f32 %v417, %v418
    %v420 = vrot.slane %v419, 2
    %v421 = vadd.f32 %v419, %v420
    %v422 = vrot.slane %v421, 1
    %v423 = vadd.f32 %v421, %v422
    %v424 = vadd.f32 %v392, %v396
    %v425 = vadd.f32 %v424, %v400
    %v426 = vadd.f32 %v425, %v404
    %v427 = vrot.slane %v426, 4
    %v428 = vadd.f32 %v426, %v427
    %v429 = vrot.slane %v428, 2
    %v430 = vadd.f32 %v428, %v429
    %v431 = vrot.slane %v430, 1
    %v432 = vadd.f32 %v430, %v431
    %v433 = vadd.f32 %v393, %v397
    %v434 = vadd.f32 %v433, %v401
    %v435 = vadd.f32 %v434, %v405
    %v436 = vrot.slane %v435, 4
    %v437 = vadd.f32 %v435, %v436
    %v438 = vrot.slane %v437, 2
    %v439 = vadd.f32 %v437, %v438
    %v440 = vrot.slane %v439, 1
    %v441 = vadd.f32 %v439, %v440
    %vm442 = vcmask 1040384
    %v443 = vsel %vm442, %v362, %v414
    %v444 = vsel %vm442, %v371, %v423
    %v445 = vsel %vm442, %v380, %v432
    %v446 = vsel %vm442, %v389, %v441
    %v451 = vcombine.low %v443, %v444
    %v452 = vcombine.low %v445, %v446
    %v454 = vunpack.c.l.s4 1983009808
    %v455 = vunpack.c.0.s8 %v454
    %v456 = vlaneseq
    %v457 = vshrl.u32 %v456, 7
    %v458 = vsub.s32 %v455, %v457
    %v459 = vrot.slane %v451, %v458
    %v461 = vunpack.c.l.s4 1983009808
    %v462 = vunpack.c.0.s8 %v461
    %v463 = vlaneseq
    %v464 = vshrl.u32 %v463, 7
    %v465 = vsub.s32 %v462, %v464
    %v466 = vrot.slane %v452, %v465
    %v467 = vcombine.low %v459, %v466
    %469 = vst [vmem:[#allocation7] sm:$0xff] %v467
    // Predicated region
    $region18: #{tpu_custom_call.1} parent=1 // pred_check
      _
    $region19: #{tpu_custom_call.1} parent=1 // pred_check_branch
      %471 = sbr.rel (0) target = $region21
    $region20: #{tpu_custom_call.1} parent=1 // pred_region
      %s473 = ssub.s32 128, 128
      %474 = vsyncadd [#allocation4], %s473
      %s476 = sshll.u32 [#allocation7], 4
      %s477 = int_to_ptr.vmem [resolvable:$true] %s476
      %479 = dma.vmem_to_hbm [thread:$0]  %s477, 128, %s2, [#allocation4]
    $region21: #{tpu_custom_call.1} parent=1 // pred_fallthru
      _
    // Predicated region
    $region22: #{tpu_custom_call.1} parent=1 // pred_check
      _
    $region23: #{tpu_custom_call.1} parent=1 // pred_check_branch
      %481 = sbr.rel (0) target = $region25
    $region24: #{tpu_custom_call.1} parent=1 // pred_region
      %482 = dma.done [#allocation4], 128
    $region25: #{tpu_custom_call.1} parent=1 // pred_fallthru
      _
    %483 = vsyncpa [#allocation3], 1
    %484 = vsyncpa [#allocation6], 1
    %485 = vsyncpa [#allocation4], 1

</llo_original>
